<compile_context>
chip_gen: v6e
topology: v6e:2x2x1
jax: 0.10.0
libtpu: 0.0.40
codegen_flags: <defaults>
</compile_context>

<pallas_src>
import functools

import jax
import jax.numpy as jnp
from jax import lax
from jax.experimental import pallas as pl
from jax.experimental.pallas import tpu as pltpu


def _round_up(n, m):
    return ((n + m - 1) // m) * m


def _dropout_constants(max_dropout_rate, num_samples):
    """Per-sample integer drop thresholds and folded keep/mean scales."""
    if num_samples == 1:
        rates = [0.0]
    else:
        rates = [max_dropout_rate * s / (num_samples - 1) for s in range(num_samples)]
    thresholds = tuple(int(round(r * float(2 ** 31))) for r in rates)   # in [0, 2^31)
    scales = tuple(1.0 / ((1.0 - r) * num_samples) for r in rates)      # 1/keep * 1/N
    return thresholds, scales


def _sample_offset(s):
    """Large odd per-sample counter offset, as a Python int that fits in int32."""
    off = ((s + 1) * 0x9E3779B9) & 0xFFFFFFFF
    if off >= (1 << 31):
        off -= 1 << 32
    return off


def _mix32(x):
    """splitmix32-style finalizer in pure int32 (wrapping mul; logical shifts
    emulated with arithmetic shift + mask) -> portable to Mosaic & interpret."""
    x = x ^ ((x >> 16) & 0xFFFF)
    x = x * 0x7FEB352D                 # wraps in int32 (two's complement)
    x = x ^ ((x >> 15) & 0x1FFFF)
    x = x * (-2073319797)              # 0x846CA68B as int32
    x = x ^ ((x >> 16) & 0xFFFF)
    return x


def _agg_dropout_weight(ctr0, shape, thresholds, scales):
    """Per-element aggregate dropout weight  sum_s keep_s * scale_s  (float32)."""
    const_w = 0.0
    weight = None
    for s, (thr, scale) in enumerate(zip(thresholds, scales)):
        if thr == 0:
            # rate == 0: every element kept -> constant contribution.
            const_w += scale
        else:
            bits = _mix32(ctr0 + _sample_offset(s))
            bits31 = (bits >> 1) & 0x7FFFFFFF          # uniform in [0, 2^31)
            keep_w = jnp.where(bits31 >= thr,
                               jnp.float32(scale), jnp.float32(0.0))
            weight = keep_w if weight is None else weight + keep_w
    if weight is None:
        return jnp.full(shape, jnp.float32(const_w))
    if const_w != 0.0:
        weight = weight + jnp.float32(const_w)
    return weight


def _msd_kernel(seed_ref, x_ref, w_ref, b_ref, o_ref, *,
                thresholds, scales, use_bf16_matmul):
    # seed_ref: SMEM (1,) int32 ; x_ref: VMEM (TB, H) f32 ;
    # w_ref: VMEM (H, Cpad) f32 ; b_ref: VMEM (1, Cpad) f32 ; o_ref: (TB, Cpad) f32
    i = pl.program_id(0)
    x = x_ref[...]
    tb, h = x.shape

    # Global element index -> unique RNG counter per element, tile and sample.
    rows = lax.broadcasted_iota(jnp.int32, (tb, h), 0)
    cols = lax.broadcasted_iota(jnp.int32, (tb, h), 1)
    ctr0 = (i * tb + rows) * h + cols + seed_ref[0]

    # Aggregate dropout weight across samples, then a SINGLE multiply by x.
    weight = _agg_dropout_weight(ctr0, (tb, h), thresholds, scales)
    lhs = weight * x

    # Single classifier matmul + one bias add (lane-dense Cpad output).
    rhs = w_ref[...]
    if use_bf16_matmul:   # v6e/v7x MXU bf16 fast path (optional)
        lhs = lhs.astype(jnp.bfloat16)
        rhs = rhs.astype(jnp.bfloat16)
    o_ref[...] = jnp.dot(lhs, rhs, preferred_element_type=jnp.float32) + b_ref[...]


def multi_sample_dropout(x, w, b, seed, *, max_dropout_rate, num_samples,
                         block_b=512, use_bf16_matmul=False):
    """x: (B, H) features, w: (H, C) classifier weight (transposed vs torch),
    b: (C,) bias.  Returns (B, C) mean logits over dropout samples."""
    x = x.astype(jnp.float32)
    B, H = x.shape
    assert w.shape[0] == H
    C = w.shape[1]
    thresholds, scales = _dropout_constants(max_dropout_rate, num_samples)

    # Lane-dense output: pad classifier columns to a multiple of 128.
    c_pad = _round_up(C, 128)
    w_p = jnp.zeros((H, c_pad), jnp.float32).at[:, :C].set(w.astype(jnp.float32))
    b_p = jnp.zeros((1, c_pad), jnp.float32).at[:, :C].set(
        b.reshape(1, C).astype(jnp.float32))

    # Batch-tiled grid (rows padded so the tile divides evenly). W/bias resident.
    # On v7x (64 MiB VMEM) lower block_b for very large H.
    tb = min(block_b, _round_up(B, 8))
    b_pad = _round_up(B, tb)
    x_p = x if b_pad == B else jnp.zeros((b_pad, H), jnp.float32).at[:B].set(x)

    kernel = functools.partial(_msd_kernel, thresholds=thresholds, scales=scales,
                               use_bf16_matmul=use_bf16_matmul)

    out = pl.pallas_call(
        kernel,
        out_shape=jax.ShapeDtypeStruct((b_pad, c_pad), jnp.float32),
        grid=(b_pad // tb,),
        in_specs=[
            pl.BlockSpec(memory_space=pltpu.MemorySpace.SMEM),   # seed (1,)
            pl.BlockSpec((tb, H), lambda i: (i, 0)),             # x row tile
            pl.BlockSpec((H, c_pad), lambda i: (0, 0)),          # W resident
            pl.BlockSpec((1, c_pad), lambda i: (0, 0)),          # bias resident
        ],
        out_specs=pl.BlockSpec((tb, c_pad), lambda i: (i, 0)),
        compiler_params=pltpu.CompilerParams(
            dimension_semantics=("parallel",)),
    )(jnp.asarray([seed], dtype=jnp.int32), x_p, w_p, b_p)

    return out[:B, :C]


def _msd_reference(x, w, b, seed, *, max_dropout_rate, num_samples):
    """Pure-JAX reference using the exact same counter-hash masks."""
    thresholds, scales = _dropout_constants(max_dropout_rate, num_samples)
    bsz, h = x.shape
    rows = jnp.arange(bsz, dtype=jnp.int32)[:, None]
    cols = jnp.arange(h, dtype=jnp.int32)[None, :]
    ctr0 = rows * h + cols + jnp.int32(seed)
    weight = _agg_dropout_weight(ctr0, (bsz, h), thresholds, scales)
    return (weight * x) @ w + b.reshape(1, -1)


if __name__ == "__main__":
    B, H, C = 8, 32, 8
    num_samples = 4
    max_dropout_rate = 0.5
    seed = 0

    key = jax.random.PRNGKey(0)
    kx, kw, kb = jax.random.split(key, 3)
    x = jax.random.normal(kx, (B, H), dtype=jnp.float32)
    w = jax.random.normal(kw, (H, C), dtype=jnp.float32) * 0.1   # classifier = Linear(H, C)
    b = jax.random.normal(kb, (C,), dtype=jnp.float32) * 0.1

    # TODO(synk): torch's nn.Dropout uses its own Philox RNG stream; masks here
    # come from a deterministic in-kernel counter-hash (TPU hardware PRNG has no
    # interpret-mode lowering), so masks differ sample-for-sample while the
    # dropout/mean semantics match.
    out = multi_sample_dropout(x, w, b, seed,
                               max_dropout_rate=max_dropout_rate,
                               num_samples=num_samples)
    jax.block_until_ready(out)
    assert out.shape == (B, C)

    ref = _msd_reference(x, w, b, seed,
                         max_dropout_rate=max_dropout_rate,
                         num_samples=num_samples)
    # Loose tolerance only because default-precision f32 MXU matmuls use bf16 passes.
    assert jnp.allclose(out, ref, rtol=1e-2, atol=1e-2), \
        float(jnp.max(jnp.abs(out - ref)))
    print("KERNEL_OK")
</pallas_src>

<mosaic_0001>
module attributes {stable_mosaic.version = 11 : i64} {
  func.func @_msd_kernel(%arg0: i32, %arg1: memref<1xi32, #tpu.memory_space<smem>>, %arg2: memref<8x32xf32, #tpu.memory_space<vmem>>, %arg3: memref<32x128xf32, #tpu.memory_space<vmem>>, %arg4: memref<1x128xf32, #tpu.memory_space<vmem>>, %arg5: memref<8x128xf32, #tpu.memory_space<vmem>>) attributes {dimension_semantics = [#tpu.dimension_semantics<parallel>], iteration_bounds = array<i64: 1>, scalar_prefetch = 0 : i64, scratch_operands = 0 : i64, tpu.core_type = #tpu.core_type<tc>, window_params = [{transform_indices = @transform_0, window_bounds = array<i64: 1>}, {transform_indices = @transform_1, window_bounds = array<i64: 8, 32>}, {pipeline_mode = #tpu.pipeline_mode<synchronous>, transform_indices = @transform_2, window_bounds = array<i64: 32, 128>}, {pipeline_mode = #tpu.pipeline_mode<synchronous>, transform_indices = @transform_3, window_bounds = array<i64: 1, 128>}, {transform_indices = @transform_4, window_bounds = array<i64: 8, 128>}]} {
    %c0 = arith.constant 0 : index
    %c0_0 = arith.constant 0 : index
    %0 = vector.load %arg2[%c0, %c0_0] : memref<8x32xf32, #tpu.memory_space<vmem>>, vector<8x32xf32>
    %1 = tpu.iota {dimensions = array<i32: 0>} : vector<8x32xi32>
    %2 = tpu.iota {dimensions = array<i32: 1>} : vector<8x32xi32>
    %c8_i32 = arith.constant 8 : i32
    %3 = arith.muli %arg0, %c8_i32 : i32
    %4 = vector.broadcast %3 : i32 to vector<8x32xi32>
    %5 = arith.addi %4, %1 : vector<8x32xi32>
    %c32_i32 = arith.constant 32 : i32
    %6 = vector.broadcast %c32_i32 : i32 to vector<8x32xi32>
    %7 = arith.muli %5, %6 : vector<8x32xi32>
    %8 = arith.addi %7, %2 : vector<8x32xi32>
    %c0_1 = arith.constant 0 : index
    %9 = memref.load %arg1[%c0_1] : memref<1xi32, #tpu.memory_space<smem>>
    %10 = vector.broadcast %9 : i32 to vector<8x32xi32>
    %11 = arith.addi %8, %10 : vector<8x32xi32>
    %c1013904242_i32 = arith.constant 1013904242 : i32
    %12 = vector.broadcast %c1013904242_i32 : i32 to vector<8x32xi32>
    %13 = arith.addi %11, %12 : vector<8x32xi32>
    %c16_i32 = arith.constant 16 : i32
    %14 = vector.broadcast %c16_i32 : i32 to vector<8x32xi32>
    %15 = arith.shrsi %13, %14 : vector<8x32xi32>
    %c65535_i32 = arith.constant 65535 : i32
    %16 = vector.broadcast %c65535_i32 : i32 to vector<8x32xi32>
    %17 = arith.andi %15, %16 : vector<8x32xi32>
    %18 = arith.xori %13, %17 : vector<8x32xi32>
    %c2146121005_i32 = arith.constant 2146121005 : i32
    %19 = vector.broadcast %c2146121005_i32 : i32 to vector<8x32xi32>
    %20 = arith.muli %18, %19 : vector<8x32xi32>
    %c15_i32 = arith.constant 15 : i32
    %21 = vector.broadcast %c15_i32 : i32 to vector<8x32xi32>
    %22 = arith.shrsi %20, %21 : vector<8x32xi32>
    %c131071_i32 = arith.constant 131071 : i32
    %23 = vector.broadcast %c131071_i32 : i32 to vector<8x32xi32>
    %24 = arith.andi %22, %23 : vector<8x32xi32>
    %25 = arith.xori %20, %24 : vector<8x32xi32>
    %c-2073319797_i32 = arith.constant -2073319797 : i32
    %26 = vector.broadcast %c-2073319797_i32 : i32 to vector<8x32xi32>
    %27 = arith.muli %25, %26 : vector<8x32xi32>
    %c16_i32_2 = arith.constant 16 : i32
    %28 = vector.broadcast %c16_i32_2 : i32 to vector<8x32xi32>
    %29 = arith.shrsi %27, %28 : vector<8x32xi32>
    %c65535_i32_3 = arith.constant 65535 : i32
    %30 = vector.broadcast %c65535_i32_3 : i32 to vector<8x32xi32>
    %31 = arith.andi %29, %30 : vector<8x32xi32>
    %32 = arith.xori %27, %31 : vector<8x32xi32>
    %c1_i32 = arith.constant 1 : i32
    %33 = vector.broadcast %c1_i32 : i32 to vector<8x32xi32>
    %34 = arith.shrsi %32, %33 : vector<8x32xi32>
    %c2147483647_i32 = arith.constant 2147483647 : i32
    %35 = vector.broadcast %c2147483647_i32 : i32 to vector<8x32xi32>
    %36 = arith.andi %34, %35 : vector<8x32xi32>
    %c357913941_i32 = arith.constant 357913941 : i32
    %37 = vector.broadcast %c357913941_i32 : i32 to vector<8x32xi32>
    %38 = arith.cmpi sge, %36, %37 : vector<8x32xi32>
    %cst = arith.constant 3.000000e-01 : f32
    %cst_4 = arith.constant 0.000000e+00 : f32
    %39 = vector.broadcast %cst : f32 to vector<8x32xf32>
    %40 = vector.broadcast %cst_4 : f32 to vector<8x32xf32>
    %41 = arith.select %38, %39, %40 : vector<8x32xi1>, vector<8x32xf32>
    %c-626627285_i32 = arith.constant -626627285 : i32
    %42 = vector.broadcast %c-626627285_i32 : i32 to vector<8x32xi32>
    %43 = arith.addi %11, %42 : vector<8x32xi32>
    %c16_i32_5 = arith.constant 16 : i32
    %44 = vector.broadcast %c16_i32_5 : i32 to vector<8x32xi32>
    %45 = arith.shrsi %43, %44 : vector<8x32xi32>
    %c65535_i32_6 = arith.constant 65535 : i32
    %46 = vector.broadcast %c65535_i32_6 : i32 to vector<8x32xi32>
    %47 = arith.andi %45, %46 : vector<8x32xi32>
    %48 = arith.xori %43, %47 : vector<8x32xi32>
    %c2146121005_i32_7 = arith.constant 2146121005 : i32
    %49 = vector.broadcast %c2146121005_i32_7 : i32 to vector<8x32xi32>
    %50 = arith.muli %48, %49 : vector<8x32xi32>
    %c15_i32_8 = arith.constant 15 : i32
    %51 = vector.broadcast %c15_i32_8 : i32 to vector<8x32xi32>
    %52 = arith.shrsi %50, %51 : vector<8x32xi32>
    %c131071_i32_9 = arith.constant 131071 : i32
    %53 = vector.broadcast %c131071_i32_9 : i32 to vector<8x32xi32>
    %54 = arith.andi %52, %53 : vector<8x32xi32>
    %55 = arith.xori %50, %54 : vector<8x32xi32>
    %c-2073319797_i32_10 = arith.constant -2073319797 : i32
    %56 = vector.broadcast %c-2073319797_i32_10 : i32 to vector<8x32xi32>
    %57 = arith.muli %55, %56 : vector<8x32xi32>
    %c16_i32_11 = arith.constant 16 : i32
    %58 = vector.broadcast %c16_i32_11 : i32 to vector<8x32xi32>
    %59 = arith.shrsi %57, %58 : vector<8x32xi32>
    %c65535_i32_12 = arith.constant 65535 : i32
    %60 = vector.broadcast %c65535_i32_12 : i32 to vector<8x32xi32>
    %61 = arith.andi %59, %60 : vector<8x32xi32>
    %62 = arith.xori %57, %61 : vector<8x32xi32>
    %c1_i32_13 = arith.constant 1 : i32
    %63 = vector.broadcast %c1_i32_13 : i32 to vector<8x32xi32>
    %64 = arith.shrsi %62, %63 : vector<8x32xi32>
    %c2147483647_i32_14 = arith.constant 2147483647 : i32
    %65 = vector.broadcast %c2147483647_i32_14 : i32 to vector<8x32xi32>
    %66 = arith.andi %64, %65 : vector<8x32xi32>
    %c715827883_i32 = arith.constant 715827883 : i32
    %67 = vector.broadcast %c715827883_i32 : i32 to vector<8x32xi32>
    %68 = arith.cmpi sge, %66, %67 : vector<8x32xi32>
    %cst_15 = arith.constant 3.750000e-01 : f32
    %cst_16 = arith.constant 0.000000e+00 : f32
    %69 = vector.broadcast %cst_15 : f32 to vector<8x32xf32>
    %70 = vector.broadcast %cst_16 : f32 to vector<8x32xf32>
    %71 = arith.select %68, %69, %70 : vector<8x32xi1>, vector<8x32xf32>
    %72 = arith.addf %41, %71 : vector<8x32xf32>
    %c2027808484_i32 = arith.constant 2027808484 : i32
    %73 = vector.broadcast %c2027808484_i32 : i32 to vector<8x32xi32>
    %74 = arith.addi %11, %73 : vector<8x32xi32>
    %c16_i32_17 = arith.constant 16 : i32
    %75 = vector.broadcast %c16_i32_17 : i32 to vector<8x32xi32>
    %76 = arith.shrsi %74, %75 : vector<8x32xi32>
    %c65535_i32_18 = arith.constant 65535 : i32
    %77 = vector.broadcast %c65535_i32_18 : i32 to vector<8x32xi32>
    %78 = arith.andi %76, %77 : vector<8x32xi32>
    %79 = arith.xori %74, %78 : vector<8x32xi32>
    %c2146121005_i32_19 = arith.constant 2146121005 : i32
    %80 = vector.broadcast %c2146121005_i32_19 : i32 to vector<8x32xi32>
    %81 = arith.muli %79, %80 : vector<8x32xi32>
    %c15_i32_20 = arith.constant 15 : i32
    %82 = vector.broadcast %c15_i32_20 : i32 to vector<8x32xi32>
    %83 = arith.shrsi %81, %82 : vector<8x32xi32>
    %c131071_i32_21 = arith.constant 131071 : i32
    %84 = vector.broadcast %c131071_i32_21 : i32 to vector<8x32xi32>
    %85 = arith.andi %83, %84 : vector<8x32xi32>
    %86 = arith.xori %81, %85 : vector<8x32xi32>
    %c-2073319797_i32_22 = arith.constant -2073319797 : i32
    %87 = vector.broadcast %c-2073319797_i32_22 : i32 to vector<8x32xi32>
    %88 = arith.muli %86, %87 : vector<8x32xi32>
    %c16_i32_23 = arith.constant 16 : i32
    %89 = vector.broadcast %c16_i32_23 : i32 to vector<8x32xi32>
    %90 = arith.shrsi %88, %89 : vector<8x32xi32>
    %c65535_i32_24 = arith.constant 65535 : i32
    %91 = vector.broadcast %c65535_i32_24 : i32 to vector<8x32xi32>
    %92 = arith.andi %90, %91 : vector<8x32xi32>
    %93 = arith.xori %88, %92 : vector<8x32xi32>
    %c1_i32_25 = arith.constant 1 : i32
    %94 = vector.broadcast %c1_i32_25 : i32 to vector<8x32xi32>
    %95 = arith.shrsi %93, %94 : vector<8x32xi32>
    %c2147483647_i32_26 = arith.constant 2147483647 : i32
    %96 = vector.broadcast %c2147483647_i32_26 : i32 to vector<8x32xi32>
    %97 = arith.andi %95, %96 : vector<8x32xi32>
    %c1073741824_i32 = arith.constant 1073741824 : i32
    %98 = vector.broadcast %c1073741824_i32 : i32 to vector<8x32xi32>
    %99 = arith.cmpi sge, %97, %98 : vector<8x32xi32>
    %cst_27 = arith.constant 5.000000e-01 : f32
    %cst_28 = arith.constant 0.000000e+00 : f32
    %100 = vector.broadcast %cst_27 : f32 to vector<8x32xf32>
    %101 = vector.broadcast %cst_28 : f32 to vector<8x32xf32>
    %102 = arith.select %99, %100, %101 : vector<8x32xi1>, vector<8x32xf32>
    %103 = arith.addf %72, %102 : vector<8x32xf32>
    %cst_29 = arith.constant 2.500000e-01 : f32
    %104 = vector.broadcast %cst_29 : f32 to vector<8x32xf32>
    %105 = arith.addf %103, %104 : vector<8x32xf32>
    %106 = arith.mulf %105, %0 : vector<8x32xf32>
    %c0_30 = arith.constant 0 : index
    %c0_31 = arith.constant 0 : index
    %107 = vector.load %arg3[%c0_30, %c0_31] : memref<32x128xf32, #tpu.memory_space<vmem>>, vector<32x128xf32>
    %cst_32 = arith.constant dense<0.000000e+00> : vector<8x128xf32>
    %108 = tpu.matmul %106, %107, %cst_32 {dimension_numbers = #tpu.dot_dimension_numbers<[1], [0], [0], [1], [0, 0, 1, 1], [], []>} : vector<8x32xf32>, vector<32x128xf32>, vector<8x128xf32> -> vector<8x128xf32>
    %c0_33 = arith.constant 0 : index
    %c0_34 = arith.constant 0 : index
    %109 = vector.load %arg4[%c0_33, %c0_34] : memref<1x128xf32, #tpu.memory_space<vmem>>, vector<1x128xf32>
    %110 = vector.broadcast %109 : vector<1x128xf32> to vector<8x128xf32>
    %111 = arith.addf %108, %110 : vector<8x128xf32>
    %c0_35 = arith.constant 0 : index
    %c0_36 = arith.constant 0 : index
    %112 = vector.load %arg5[%c0_35, %c0_36] : memref<8x128xf32, #tpu.memory_space<vmem>>, vector<8x128xf32>
    tpu.vector_store %arg5[%c0_35, %c0_36], %111 {strides = array<i32>} : memref<8x128xf32, #tpu.memory_space<vmem>>, vector<8x128xf32>,
    return
  }
  func.func @transform_0(%arg0: i32) -> i32 {
    %c0_i32 = arith.constant 0 : i32
    %c0_i32_0 = arith.constant 0 : i32
    return %c0_i32 : i32
  }
  func.func @transform_1(%arg0: i32) -> (i32, i32) {
    %c0_i32 = arith.constant 0 : i32
    %c0_i32_0 = arith.constant 0 : i32
    return %arg0, %c0_i32 : i32, i32
  }
  func.func @transform_2(%arg0: i32) -> (i32, i32) {
    %c0_i32 = arith.constant 0 : i32
    %c0_i32_0 = arith.constant 0 : i32
    %c0_i32_1 = arith.constant 0 : i32
    return %c0_i32, %c0_i32_0 : i32, i32
  }
  func.func @transform_3(%arg0: i32) -> (i32, i32) {
    %c0_i32 = arith.constant 0 : i32
    %c0_i32_0 = arith.constant 0 : i32
    %c0_i32_1 = arith.constant 0 : i32
    return %c0_i32, %c0_i32_0 : i32, i32
  }
  func.func @transform_4(%arg0: i32) -> (i32, i32) {
    %c0_i32 = arith.constant 0 : i32
    %c0_i32_0 = arith.constant 0 : i32
    return %arg0, %c0_i32 : i32, i32
  }
}

</mosaic_0001>

<llo_original>
// kernel: tpu_custom_call.1
$region0: #{tpu_custom_call.1}
  #allocation0 [shape = 'u32[]', space=smem, size = 0x4, offset = 0x4, fixed_abs, tag = 'smem constant byte address 0x4 - core index']
  #allocation1 [shape = 'u32[144,128]{1,0:T(1,128)}', space=vmem, size = 0x12000, scoped, tag = 'internal scratch']
  #allocation2 [shape = 's32[1]{0:T(128)S(6)}', space=smem, size = 0x200, scoped, tag = 'scoped memory for tpu_custom_call.1']
  %s0 = inlined_call_operand.<no memory space> [shape: s32[1], index: 0, kind: input, shape index: {}]
  %s1 = inlined_call_operand.hbm [shape: f32[8,32], index: 1, kind: input, shape index: {}]
  %s2 = inlined_call_operand.hbm [shape: f32[32,128], index: 2, kind: input, shape index: {}]
  %s3 = inlined_call_operand.vmem [shape: f32[1,128], index: 3, kind: input, shape index: {}]
  %s4 = inlined_call_operand.hbm [shape: f32[8,128], index: 4, kind: output, shape index: {}]
  %s5 = sld [smem:[#allocation0]]
  $region34: #{tpu_custom_call.1} parent=0
    _
  %s7 = ssub.s32 1, %s5
  %s8 = scalar_select 0, %s7, %s5
  %9 = sst [smem:[#allocation2]] %s0
  $region1: #{tpu_custom_call.1} parent=0
    #allocation3 [shape = 'u8[4096]{0}', space=vmem, size = 0x1000, scoped, tag = 'input window, operand 1, single buffered']
    #allocation4 [shape = 's32[1]{0}', space=sflag, size = 0x4, scoped, tag = 'scoped memory for tpu_custom_call.1']
    #allocation5 [shape = 's32[1]{0}', space=sflag, size = 0x4, scoped, tag = 'scoped memory for tpu_custom_call.1']
    #allocation6 [shape = 'u8[16384]{0}', space=vmem, size = 0x4000, scoped, tag = 'input window, operand 2, single buffered']
    #allocation7 [shape = 's32[1]{0}', space=sflag, size = 0x4, scoped, tag = 'scoped memory for tpu_custom_call.1']
    #allocation8 [shape = 'u8[4096]{0}', space=vmem, size = 0x1000, scoped, tag = 'output window, operand 0, single buffered']
    %10 = vsyncpa [#allocation4], 0
    %11 = vsyncpa [#allocation7], 0
    %12 = vsyncpa [#allocation5], 0
    // Predicated region
    $region2: #{tpu_custom_call.1} parent=1 // pred_check
      _
    $region3: #{tpu_custom_call.1} parent=1 // pred_check_branch
      %14 = sbr.rel (0) target = $region5
    $region4: #{tpu_custom_call.1} parent=1 // pred_region
      _
    $region5: #{tpu_custom_call.1} parent=1 // pred_fallthru
      _
    // Predicated region
    $region6: #{tpu_custom_call.1} parent=1 // pred_check
      _
    $region7: #{tpu_custom_call.1} parent=1 // pred_check_branch
      %16 = sbr.rel (0) target = $region9
    $region8: #{tpu_custom_call.1} parent=1 // pred_region
      %s18 = ssub.s32 128, 128
      %19 = vsyncadd [#allocation4], %s18
      %s21 = sshll.u32 [#allocation3], 4
      %s22 = int_to_ptr.vmem [resolvable:$true] %s21
      %24 = dma.hbm_to_vmem [thread:$0]  %s1, 128, %s22, [#allocation4]
    $region9: #{tpu_custom_call.1} parent=1 // pred_fallthru
      _
    // Predicated region
    $region10: #{tpu_custom_call.1} parent=1 // pred_check
      _
    $region11: #{tpu_custom_call.1} parent=1 // pred_check_branch
      %26 = sbr.rel (0) target = $region13
    $region12: #{tpu_custom_call.1} parent=1 // pred_region
      %s28 = ssub.s32 512, 512
      %29 = vsyncadd [#allocation7], %s28
      %s30 = sshll.u32 [#allocation6], 4
      %s31 = int_to_ptr.vmem [resolvable:$true] %s30
      %36 = dma.hbm_to_vmem [thread:$0]  %s2, 512, %s31, [#allocation7], 128, 128, 8
    $region13: #{tpu_custom_call.1} parent=1 // pred_fallthru
      _
    // Predicated region
    $region14: #{tpu_custom_call.1} parent=1 // pred_check
      _
    $region15: #{tpu_custom_call.1} parent=1 // pred_check_branch
      %38 = sbr.rel (0) target = $region17
    $region16: #{tpu_custom_call.1} parent=1 // pred_region
      _
    $region17: #{tpu_custom_call.1} parent=1 // pred_fallthru
      _
    // Predicated region
    $region18: #{tpu_custom_call.1} parent=1 // pred_check
      _
    $region19: #{tpu_custom_call.1} parent=1 // pred_check_branch
      %40 = sbr.rel (0) target = $region21
    $region20: #{tpu_custom_call.1} parent=1 // pred_region
      %41 = dma.done [#allocation4], 128
    $region21: #{tpu_custom_call.1} parent=1 // pred_fallthru
      _
    // Predicated region
    $region22: #{tpu_custom_call.1} parent=1 // pred_check
      _
    $region23: #{tpu_custom_call.1} parent=1 // pred_check_branch
      %43 = sbr.rel (0) target = $region25
    $region24: #{tpu_custom_call.1} parent=1 // pred_region
      %44 = dma.done [#allocation7], 512
    $region25: #{tpu_custom_call.1} parent=1 // pred_fallthru
      _
    %v45 = vld [vmem:[#allocation3] sm:$0xff]
    %v46 = vlaneseq
    %v47 = vshrl.u32 %v46, 7
    %v48 = vlaneseq
    %v49 = vand.u32 %v48, 127
    %s50 = smul.u32 0, 8
    %v51 = vstv %s50
    %v52 = vadd.s32 %v51, %v47
    %v53 = vmul.u32 %v52, 32
    %v54 = vadd.s32 %v53, %v49
    %s55 = sld [smem:[#allocation2]]
    %v56 = vstv %s55
    %v57 = vadd.s32 %v54, %v56
    %v58 = vadd.s32 %v57, 1013904242
    %v59 = vshra.s32 %v58, 16
    %v60 = vand.u32 %v59, 65535
    %v61 = vxor.u32 %v58, %v60
    %v62 = vmul.u32 %v61, 2146121005
    %v63 = vshra.s32 %v62, 15
    %v64 = vand.u32 %v63, 131071
    %v65 = vxor.u32 %v62, %v64
    %v66 = vmul.u32 %v65, 2221647499
    %v67 = vshra.s32 %v66, 16
    %v68 = vand.u32 %v67, 65535
    %v69 = vxor.u32 %v66, %v68
    %v70 = vshra.s32 %v69, 1
    %v71 = vand.u32 %v70, 2147483647
    %vm72 = vcmp.ge.s32.totalorder %v71, 357913941
    %v73 = vsel %vm72, 0.3, 0.0
    %v74 = vadd.s32 %v57, 3668340011
    %v75 = vshra.s32 %v74, 16
    %v76 = vand.u32 %v75, 65535
    %v77 = vxor.u32 %v74, %v76
    %v78 = vmul.u32 %v77, 2146121005
    %v79 = vshra.s32 %v78, 15
    %v80 = vand.u32 %v79, 131071
    %v81 = vxor.u32 %v78, %v80
    %v82 = vmul.u32 %v81, 2221647499
    %v83 = vshra.s32 %v82, 16
    %v84 = vand.u32 %v83, 65535
    %v85 = vxor.u32 %v82, %v84
    %v86 = vshra.s32 %v85, 1
    %v87 = vand.u32 %v86, 2147483647
    %vm88 = vcmp.ge.s32.totalorder %v87, 715827883
    %v89 = vsel %vm88, 0.375, 0.0
    %v90 = vadd.f32 %v73, %v89
    %v91 = vadd.s32 %v57, 2027808484
    %v92 = vshra.s32 %v91, 16
    %v93 = vand.u32 %v92, 65535
    %v94 = vxor.u32 %v91, %v93
    %v95 = vmul.u32 %v94, 2146121005
    %v96 = vshra.s32 %v95, 15
    %v97 = vand.u32 %v96, 131071
    %v98 = vxor.u32 %v95, %v97
    %v99 = vmul.u32 %v98, 2221647499
    %v100 = vshra.s32 %v99, 16
    %v101 = vand.u32 %v100, 65535
    %v102 = vxor.u32 %v99, %v101
    %v103 = vshra.s32 %v102, 1
    %v104 = vand.u32 %v103, 2147483647
    %vm105 = vcmp.ge.s32.totalorder %v104, 1073741824
    %v106 = vsel %vm105, 0.5, 0.0
    %v107 = vadd.f32 %v90, %v106
    %v108 = vadd.f32 %v107, 0.25
    %v109 = vmul.f32 %v108, %v45
    %v110 = vld [vmem:[#allocation6] sm:$0xff]
    %v111 = vld [vmem:[#allocation6 + $0x8] sm:$0xff]
    %v112 = vld [vmem:[#allocation6 + $0x10] sm:$0xff]
    %v113 = vld [vmem:[#allocation6 + $0x18] sm:$0xff]
    %v114 = vld [vmem:[%s3] sm:$0x1]
    %v116 = vlaneseq
    %v117 = vshrl.u32 %v116, 7
    %v118 = vsub.s32 0, %v117
    %v119 = vrot.slane %v114, %v118
    %vm121 = vcmask 261120
    %v123 = vsel %vm121, %v109, 0
    %125 = vmatprep.subr.mxu0 0.0
    %126 = vmatpush1.msra.mxu0 0.0
    %127 = vmatprep.subr.mxu0 0.0
    %128 = vmatpush1.msra.mxu0 0.0
    %129 = vmatprep.subr.mxu0 0.0
    %130 = vmatpush1.msra.mxu0 0.0
    %131 = vmatprep.subr.mxu0 0.0
    %132 = vmatpush1.msra.mxu0 0.0
    %133 = vmatprep.subr.mxu0 0.0
    %134 = vmatpush1.msra.mxu0 0.0
    %135 = vmatprep.subr.mxu0 0.0
    %136 = vmatpush1.msra.mxu0 0.0
    %137 = vmatprep.subr.mxu0 0.0
    %138 = vmatpush1.msra.mxu0 0.0
    %139 = vmatprep.subr.mxu0 0.0
    %140 = vmatpush1.msra.mxu0 0.0
    %141 = vmatprep.subr.mxu0 0.0
    %142 = vmatpush1.msra.mxu0 0.0
    %143 = vmatprep.subr.mxu0 0.0
    %144 = vmatpush1.msra.mxu0 0.0
    %145 = vmatprep.subr.mxu0 0.0
    %146 = vmatpush1.msra.mxu0 0.0
    %147 = vmatprep.subr.mxu0 0.0
    %148 = vmatpush1.msra.mxu0 0.0
    %149 = vmatprep.subr.mxu0 0.0
    %150 = vmatpush1.msra.mxu0 %v113
    %151 = vmatprep.subr.mxu0 0.0
    %152 = vmatpush1.msra.mxu0 %v112
    %153 = vmatprep.subr.mxu0 0.0
    %154 = vmatpush1.msra.mxu0 %v111
    %155 = vmatprep.subr.mxu0 0.0
    %156 = vmatpush1.msra.mxu0 %v110
    %157 = vmatprep.subr.mxu0 0.0
    %158 = vmatpush2.msra.mxu0 0.0
    %159 = vmatprep.subr.mxu0 0.0
    %160 = vmatpush2.msra.mxu0 0.0
    %161 = vmatprep.subr.mxu0 0.0
    %162 = vmatpush2.msra.mxu0 0.0
    %163 = vmatprep.subr.mxu0 0.0
    %164 = vmatpush2.msra.mxu0 0.0
    %165 = vmatprep.subr.mxu0 0.0
    %166 = vmatpush2.msra.mxu0 0.0
    %167 = vmatprep.subr.mxu0 0.0
    %168 = vmatpush2.msra.mxu0 0.0
    %169 = vmatprep.subr.mxu0 0.0
    %170 = vmatpush2.msra.mxu0 0.0
    %171 = vmatprep.subr.mxu0 0.0
    %172 = vmatpush2.msra.mxu0 0.0
    %173 = vmatprep.subr.mxu0 0.0
    %174 = vmatpush2.msra.mxu0 0.0
    %175 = vmatprep.subr.mxu0 0.0
    %176 = vmatpush2.msra.mxu0 0.0
    %177 = vmatprep.subr.mxu0 0.0
    %178 = vmatpush2.msra.mxu0 0.0
    %179 = vmatprep.subr.mxu0 0.0
    %180 = vmatpush2.msra.mxu0 0.0
    %181 = vmatprep.subr.mxu0 0.0
    %182 = vmatpush2.msra.mxu0 0.0
    %183 = vmatprep.subr.mxu0 0.0
    %184 = vmatpush2.msra.mxu0 0.0
    %185 = vmatprep.subr.mxu0 0.0
    %186 = vmatpush2.msra.mxu0 0.0
    %187 = vmatprep.subr.mxu0 0.0
    %188 = vmatpush2.msra.mxu0 0.0
    %189 = vmatprep.mubr.f32.mxu0 0.0
    %190 = vmatmul.mubr.f32.gmra.mxu0 %v123
    %v191 = vpop.f32.mrf.mxu0
    %v192 = vadd.f32 %v119, %v191
    %v193 = vpop.f32.mrf.mxu0
    %194 = vdwg.mxu0
    %195 = vst [vmem:[#allocation8] sm:$0xff] %v192
    // Predicated region
    $region26: #{tpu_custom_call.1} parent=1 // pred_check
      _
    $region27: #{tpu_custom_call.1} parent=1 // pred_check_branch
      %197 = sbr.rel (0) target = $region29
    $region28: #{tpu_custom_call.1} parent=1 // pred_region
      %s199 = ssub.s32 128, 128
      %200 = vsyncadd [#allocation5], %s199
      %s202 = sshll.u32 [#allocation8], 4
      %s203 = int_to_ptr.vmem [resolvable:$true] %s202
      %205 = dma.vmem_to_hbm [thread:$0]  %s203, 128, %s4, [#allocation5]
    $region29: #{tpu_custom_call.1} parent=1 // pred_fallthru
      _
    // Predicated region
    $region30: #{tpu_custom_call.1} parent=1 // pred_check
      _
    $region31: #{tpu_custom_call.1} parent=1 // pred_check_branch
      %207 = sbr.rel (0) target = $region33
    $region32: #{tpu_custom_call.1} parent=1 // pred_region
      %208 = dma.done [#allocation5], 128
    $region33: #{tpu_custom_call.1} parent=1 // pred_fallthru
      _
    %209 = vsyncpa [#allocation4], 1
    %210 = vsyncpa [#allocation7], 1
    %211 = vsyncpa [#allocation5], 1

</llo_original>
